<compile_context>
chip_gen: v7x
topology: tpu7x:2x2x1
jax: 0.10.0
libtpu: 0.0.40
codegen_flags: <defaults>
</compile_context>

<pallas_src>
import jax
import jax.numpy as jnp
from jax.experimental import pallas as pl
from jax.experimental.pallas import tpu as pltpu


def _round_up(x, m):
    return (x + m - 1) // m * m


def _conv3x3_s2_matmul_kernel(p_ref, w_ref, o_ref):
    # p_ref: (tm, Kp)       bf16 im2col tile (K = 9*Cin + 1 bias col, zero-padded)
    # w_ref: (Kp, Coutp)    bf16 weight matrix with bias folded in as a row
    # o_ref: (tm, Coutp)    output tile (input dtype)
    o_ref[...] = jnp.dot(
        p_ref[...], w_ref[...], preferred_element_type=jnp.float32
    ).astype(o_ref.dtype)


def conv_start_forward(x_nchw, weight, bias, *, tm=512,
                       compute_dtype=jnp.bfloat16):
    """Conv2d(Cin, Cout, kernel_size=3, stride=2, padding=1).

    x_nchw: (N, Cin, H, W), weight: (Cout, Cin, 3, 3), bias: (Cout,)
    returns (N, Cout, Ho, Wo) with Ho = (H + 2 - 3)//2 + 1 (same for Wo).
    """
    n, cin, h, w = x_nchw.shape
    cout = weight.shape[0]
    ho = (h + 2 - 3) // 2 + 1
    wo = (w + 2 - 3) // 2 + 1
    m = ho * wo

    # Tiling / padding sizes.
    tm_eff = min(tm, _round_up(m, 8))        # M tile, multiple of 8
    m_pad = _round_up(m, tm_eff)
    k = 9 * cin + 1                          # +1 for the folded-in bias column
    k_pad = _round_up(k, 128)                # lane-dense LHS
    cout_pad = _round_up(cout, 128)          # lane-dense output / full MXU N

    # --- glue (fused by XLA under jit): NHWC, pad=1, stride-2 im2col in
    #     (N, M, 9*Cin) layout, plus ones column for the bias -----------------
    x_nhwc = jnp.transpose(x_nchw, (0, 2, 3, 1)).astype(compute_dtype)
    x_p = jnp.pad(x_nhwc, ((0, 0), (1, 1), (1, 1), (0, 0)))
    taps = [x_p[:, kh:kh + 2 * ho:2, kw:kw + 2 * wo:2, :]
            for kh in range(3) for kw in range(3)]
    patches = jnp.concatenate(taps, axis=-1).reshape(n, m, 9 * cin)
    ones_col = jnp.ones((n, m, 1), compute_dtype)
    patches = jnp.concatenate([patches, ones_col], axis=-1)          # (N, M, K)
    patches = jnp.pad(
        patches, ((0, 0), (0, m_pad - m), (0, k_pad - k)))           # (N, Mp, Kp)

    # Weight matrix: (kh, kw, cin) row-major -> matches the tap concat order.
    w_mat = jnp.transpose(weight, (2, 3, 1, 0)).reshape(9 * cin, cout)
    w_mat = jnp.concatenate([w_mat, bias.reshape(1, cout)], axis=0)  # (K, Cout)
    w_mat = jnp.pad(
        w_mat, ((0, k_pad - k), (0, cout_pad - cout))).astype(compute_dtype)

    # --- Pallas kernel: one MXU matmul + store per (batch, M-tile) -----------
    out = pl.pallas_call(
        _conv3x3_s2_matmul_kernel,
        out_shape=jax.ShapeDtypeStruct((n, m_pad, cout_pad), x_nchw.dtype),
        grid=(n, m_pad // tm_eff),
        in_specs=[
            pl.BlockSpec((None, tm_eff, k_pad), lambda b, i: (b, i, 0)),
            pl.BlockSpec((k_pad, cout_pad), lambda b, i: (0, 0)),
        ],
        out_specs=pl.BlockSpec((None, tm_eff, cout_pad), lambda b, i: (b, i, 0)),
        compiler_params=pltpu.CompilerParams(
            dimension_semantics=("parallel", "parallel")),
    )(patches, w_mat)

    out = out[:, :m, :cout].reshape(n, ho, wo, cout)
    return jnp.transpose(out, (0, 3, 1, 2))                          # back to NCHW


if __name__ == "__main__":
    N, Cin, Cout, H, W = 2, 4, 8, 16, 16

    key = jax.random.PRNGKey(0)
    kx, kw, kb = jax.random.split(key, 3)
    x = jax.random.normal(kx, (N, Cin, H, W), jnp.float32)

    # deterministic params, same shapes / init scale as nn.Conv2d default
    fan_in = Cin * 3 * 3
    bound = 1.0 / (fan_in ** 0.5)
    weight = jax.random.uniform(kw, (Cout, Cin, 3, 3), jnp.float32, -bound, bound)
    bias = jax.random.uniform(kb, (Cout,), jnp.float32, -bound, bound)

    fwd = jax.jit(conv_start_forward)
    y = jax.block_until_ready(fwd(x, weight, bias))

    # cross-check against XLA's conv (f32 reference; kernel feeds the MXU bf16)
    y_ref = jax.lax.conv_general_dilated(
        x, weight, window_strides=(2, 2), padding=((1, 1), (1, 1)),
        dimension_numbers=("NCHW", "OIHW", "NCHW"),
    ) + bias.reshape(1, Cout, 1, 1)

    assert y.shape == (N, Cout, H // 2, W // 2), y.shape
    assert jnp.allclose(y, y_ref, atol=5e-2, rtol=5e-2), float(
        jnp.max(jnp.abs(y - y_ref)))
    print("KERNEL_OK")
</pallas_src>

<mosaic_0001>
module attributes {stable_mosaic.version = 11 : i64} {
  func.func @_conv3x3_s2_matmul_kernel(%arg0: i32, %arg1: i32, %arg2: memref<1x64x128xbf16, #tpu.memory_space<vmem>>, %arg3: memref<128x128xbf16, #tpu.memory_space<vmem>>, %arg4: memref<1x64x128xf32, #tpu.memory_space<vmem>>) attributes {dimension_semantics = [#tpu.dimension_semantics<parallel>, #tpu.dimension_semantics<parallel>], iteration_bounds = array<i64: 2, 1>, scalar_prefetch = 0 : i64, scratch_operands = 0 : i64, tpu.core_type = #tpu.core_type<tc>, window_params = [{transform_indices = @transform_0, window_bounds = array<i64: 1, 64, 128>}, {pipeline_mode = #tpu.pipeline_mode<synchronous>, transform_indices = @transform_1, window_bounds = array<i64: 128, 128>}, {transform_indices = @transform_2, window_bounds = array<i64: 1, 64, 128>}]} {
    %c0 = arith.constant 0 : index
    %c0_0 = arith.constant 0 : index
    %c0_1 = arith.constant 0 : index
    %0 = vector.load %arg2[%c0, %c0_0, %c0_1] : memref<1x64x128xbf16, #tpu.memory_space<vmem>>, vector<1x64x128xbf16>
    %1 = vector.shape_cast %0 : vector<1x64x128xbf16> to vector<64x128xbf16>
    %c0_2 = arith.constant 0 : index
    %c0_3 = arith.constant 0 : index
    %2 = vector.load %arg3[%c0_2, %c0_3] : memref<128x128xbf16, #tpu.memory_space<vmem>>, vector<128x128xbf16>
    %cst = arith.constant dense<0.000000e+00> : vector<64x128xf32>
    %3 = tpu.matmul %1, %2, %cst {dimension_numbers = #tpu.dot_dimension_numbers<[1], [0], [0], [1], [0, 0, 1, 1], [], []>} : vector<64x128xbf16>, vector<128x128xbf16>, vector<64x128xf32> -> vector<64x128xf32>
    %c0_4 = arith.constant 0 : index
    %c0_5 = arith.constant 0 : index
    %c0_6 = arith.constant 0 : index
    %4 = vector.load %arg4[%c0_4, %c0_5, %c0_6] : memref<1x64x128xf32, #tpu.memory_space<vmem>>, vector<1x64x128xf32>
    %5 = vector.shape_cast %4 : vector<1x64x128xf32> to vector<64x128xf32>
    %6 = vector.shape_cast %3 : vector<64x128xf32> to vector<1x64x128xf32>
    tpu.vector_store %arg4[%c0_4, %c0_5, %c0_6], %6 {strides = array<i32>} : memref<1x64x128xf32, #tpu.memory_space<vmem>>, vector<1x64x128xf32>,
    return
  }
  func.func @transform_0(%arg0: i32, %arg1: i32) -> (i32, i32, i32) {
    %c0_i32 = arith.constant 0 : i32
    %c0_i32_0 = arith.constant 0 : i32
    return %arg0, %arg1, %c0_i32 : i32, i32, i32
  }
  func.func @transform_1(%arg0: i32, %arg1: i32) -> (i32, i32) {
    %c0_i32 = arith.constant 0 : i32
    %c0_i32_0 = arith.constant 0 : i32
    %c0_i32_1 = arith.constant 0 : i32
    return %c0_i32, %c0_i32_0 : i32, i32
  }
  func.func @transform_2(%arg0: i32, %arg1: i32) -> (i32, i32, i32) {
    %c0_i32 = arith.constant 0 : i32
    %c0_i32_0 = arith.constant 0 : i32
    return %arg0, %arg1, %c0_i32 : i32, i32, i32
  }
}

</mosaic_0001>

<llo_original>
// kernel: conv_start_forward.1
$region0: #{conv_start_forward.1}
  #allocation0 [shape = 'u32[]', space=smem, size = 0x4, offset = 0x4, fixed_abs, tag = 'smem constant byte address 0x4 - core index']
  #allocation1 [shape = 'u32[144,128]{1,0:T(1,128)}', space=vmem, size = 0x12000, scoped, tag = 'internal scratch']
  %s0 = inlined_call_operand.vmem [shape: bf16[2,64,128], index: 0, kind: input, shape index: {}]
  %s1 = inlined_call_operand.vmem [shape: bf16[128,128], index: 1, kind: input, shape index: {}]
  %s2 = inlined_call_operand.vmem [shape: f32[2,64,128], index: 2, kind: output, shape index: {}]
  %s3 = sld [smem:[#allocation0]]
  $region41: #{conv_start_forward.1} parent=0
    _
  %s5 = ssub.s32 1, %s3
  %s6 = scalar_select 0, %s5, %s3
  loop: start=0, step=1, limit=4
  $region2: #{conv_start_forward.1} parent=0 // loop_pre_header
    _
  $region3: #{conv_start_forward.1} parent=0 // loop_header
    %s8 = sphi 0, %s12
    %p9 = scmp.ge.s32.totalorder %s8, 4
    %s15 = sphi 0, %s27
    %s16 = sphi 0, %s23
    %s17 = sphi 0, %s15
    %s18 = sphi 0, %s16
    %s19 = sphi 0, %s17
    %s20 = sphi 0, %s18
    %s32 = sphi 0, %s34
    %s35 = sphi 0, %s32
    %s36 = sphi 0, %s35
    %s52 = sphi 0, %s36
    %s56 = sphi 0, %s56
    %s58 = sphi 0, %s56
    %s59 = sphi 0, %s58
    %s73 = sphi 0, %s59
    %s81 = sphi 0, %s83
    %s84 = sphi 0, %s81
    %s85 = sphi 0, %s84
    %s101 = sphi 0, %s85
  $region4: #{conv_start_forward.1} parent=0 // loop_header_branch
    %11 = sbr.rel (%p9) target = $region8
  $region5: #{conv_start_forward.1} parent=0 // loop_body
    %s13 = ssub.s32 %s8, 1
    %s14 = ssub.s32 %s8, 2
    %s21 = sadd.s32 1, %s16
    %p22 = scmp.ge.s32.totalorder %s21, 1
    %s23 = scalar_select %p22, 0, %s21
    %s24 = sadd.s32 1, %s15
    %s25 = scalar_select %p22, %s24, %s15
    %p26 = scmp.ge.s32.totalorder %s25, 2
    %s27 = scalar_select %p26, 0, %s25
    %s28 = ssub.s32 %s15, %s27
    %s29 = ssub.s32 %s16, %s23
    %s30 = sor.u32 %s28, %s29
    %p31 = scmp.eq.s32.totalorder %s30, 0
    %s33 = sadd.s32 %s32, 1
    %s34 = scalar_select %p31, %s32, %s33
    %p37 = pneg %p31
    %p38 = scmp.eq.s32.totalorder %s8, 1
    %p39 = por %p37, %p38
    %p40 = scmp.ne.s32.totalorder %s32, %s35
    %p41 = scmp.eq.s32.totalorder %s8, 0
    %p42 = por %p40, %p41
    %p43 = scmp.ne.s32.totalorder %s32, %s35
    %p44 = scmp.eq.s32.totalorder %s13, 1
    %p45 = por %p43, %p44
    %p46 = scmp.ne.s32.totalorder %s35, %s36
    %p47 = scmp.eq.s32.totalorder %s13, 0
    %p48 = por %p46, %p47
    %p49 = scmp.ne.s32.totalorder %s35, %s36
    %p50 = scmp.eq.s32.totalorder %s14, 1
    %p51 = por %p49, %p50
    %p53 = scmp.ne.s32.totalorder %s36, %s52
    %p54 = scmp.eq.s32.totalorder %s14, 0
    %p55 = por %p53, %p54
    %s57 = sadd.s32 %s56, 1
    %p60 = scmp.eq.s32.totalorder %s8, 1
    %p61 = scmp.ne.s32.totalorder %s56, %s58
    %p62 = scmp.eq.s32.totalorder %s8, 0
    %p63 = por %p61, %p62
    %p64 = scmp.ne.s32.totalorder %s56, %s58
    %p65 = scmp.eq.s32.totalorder %s13, 1
    %p66 = por %p64, %p65
    %p67 = scmp.ne.s32.totalorder %s58, %s59
    %p68 = scmp.eq.s32.totalorder %s13, 0
    %p69 = por %p67, %p68
    %p70 = scmp.ne.s32.totalorder %s58, %s59
    %p71 = scmp.eq.s32.totalorder %s14, 1
    %p72 = por %p70, %p71
    %p74 = scmp.ne.s32.totalorder %s59, %s73
    %p75 = scmp.eq.s32.totalorder %s14, 0
    %p76 = por %p74, %p75
    %s77 = ssub.s32 %s15, %s27
    %s78 = ssub.s32 %s16, %s23
    %s79 = sor.u32 %s77, %s78
    %p80 = scmp.eq.s32.totalorder %s79, 0
    %s82 = sadd.s32 %s81, 1
    %s83 = scalar_select %p80, %s81, %s82
    %p86 = pneg %p80
    %p87 = scmp.eq.s32.totalorder %s8, 1
    %p88 = por %p86, %p87
    %p89 = scmp.ne.s32.totalorder %s81, %s84
    %p90 = scmp.eq.s32.totalorder %s8, 0
    %p91 = por %p89, %p90
    %p92 = scmp.ne.s32.totalorder %s81, %s84
    %p93 = scmp.eq.s32.totalorder %s13, 1
    %p94 = por %p92, %p93
    %p95 = scmp.ne.s32.totalorder %s84, %s85
    %p96 = scmp.eq.s32.totalorder %s13, 0
    %p97 = por %p95, %p96
    %p98 = scmp.ne.s32.totalorder %s84, %s85
    %p99 = scmp.eq.s32.totalorder %s14, 1
    %p100 = por %p98, %p99
    %p102 = scmp.ne.s32.totalorder %s85, %s101
    %p103 = scmp.eq.s32.totalorder %s14, 0
    %p104 = por %p102, %p103
    %p105 = scmp.le.s32.totalorder 1, %s8
    %p106 = scmp.lt.s32.totalorder %s8, 3
    %p107 = pnand %p105, %p106
    %p108 = pneg %p107
    // Predicated region
    $region9: #{conv_start_forward.1} parent=5 // pred_check
      _
    $region10: #{conv_start_forward.1} parent=5 // pred_check_branch
      %110 = sbr.rel (%p107) target = $region12
    $region11: #{conv_start_forward.1} parent=5 // pred_region
      %s111 = ssub.s32 %s8, 1
      // Predicated region
      $region13: #{conv_start_forward.1} parent=11 // pred_check
        %p112 = pneg %p69
      $region14: #{conv_start_forward.1} parent=11 // pred_check_branch
        %114 = sbr.rel (%p112) target = $region16
      $region15: #{conv_start_forward.1} parent=11 // pred_region
        _
      $region16: #{conv_start_forward.1} parent=11 // pred_fallthru
        _
    $region12: #{conv_start_forward.1} parent=5 // pred_fallthru
      _
    %p115 = scmp.lt.s32.totalorder %s8, 2
    // Predicated region
    $region17: #{conv_start_forward.1} parent=5 // pred_check
      %p116 = pneg %p115
    $region18: #{conv_start_forward.1} parent=5 // pred_check_branch
      %118 = sbr.rel (%p116) target = $region20
    $region19: #{conv_start_forward.1} parent=5 // pred_region
      // Predicated region
      $region21: #{conv_start_forward.1} parent=19 // pred_check
        %p119 = pneg %p42
      $region22: #{conv_start_forward.1} parent=19 // pred_check_branch
        %121 = sbr.rel (%p119) target = $region24
      $region23: #{conv_start_forward.1} parent=19 // pred_region
        %s122 = smul.u32 8, %s16
        %p123 = scmp.lt.s32.totalorder %s15, 1
        %s124 = scalar_select %p123, %s15, 1
        %p125 = scmp.lt.s32.totalorder %s122, 7
        %s126 = scalar_select %p125, %s122, 7
        %s127 = smul.addr %s124, 8
        %s128 = sadd.s32 %s126, %s127
        %s129 = smul.addr %s128, 4
        %s130 = scalar_lea.vmem %s0, %s129
        %s131 = smul.u32 8, %s16
      $region24: #{conv_start_forward.1} parent=19 // pred_fallthru
        _
    $region20: #{conv_start_forward.1} parent=5 // pred_fallthru
      _
    %p132 = scmp.le.s32.totalorder 1, %s8
    %p133 = scmp.lt.s32.totalorder %s8, 3
    %p134 = pnand %p132, %p133
    %p135 = pneg %p134
    // Predicated region
    $region25: #{conv_start_forward.1} parent=5 // pred_check
      _
    $region26: #{conv_start_forward.1} parent=5 // pred_check_branch
      %137 = sbr.rel (%p134) target = $region28
    $region27: #{conv_start_forward.1} parent=5 // pred_region
      %s138 = ssub.s32 %s8, 1
      %s139 = smul.u32 8, %s18
      %p140 = scmp.lt.s32.totalorder %s17, 1
      %s141 = scalar_select %p140, %s17, 1
      %p142 = scmp.lt.s32.totalorder %s139, 7
      %s143 = scalar_select %p142, %s139, 7
      %s144 = smul.addr %s141, 8
      %s145 = sadd.s32 %s143, %s144
      %s146 = smul.addr %s145, 4
      %s147 = scalar_lea.vmem %s0, %s146
      %p148 = pneg %p48
      %p149 = pneg %p45
      %p150 = pneg %p69
      %p151 = pneg %p66
      %p152 = pneg %p97
      %p153 = pneg %p94
      %s154 = smul.u32 8, %s18
      %p155 = scmp.lt.s32.totalorder %s17, 1
      %s156 = scalar_select %p155, %s17, 1
      %p157 = scmp.lt.s32.totalorder %s154, 7
      %s158 = scalar_select %p157, %s154, 7
      %s159 = smul.addr %s156, 8
      %s160 = sadd.s32 %s158, %s159
      %s161 = smul.addr %s160, 8
      %s162 = scalar_lea.vmem %s2, %s161
      %s163 = smul.u32 8, %s18
      %p164 = scmp.lt.s32.totalorder %s17, 1
      %s165 = scalar_select %p164, %s17, 1
      %p166 = scmp.lt.s32.totalorder %s163, 7
      %s167 = scalar_select %p166, %s163, 7
      %s168 = smul.addr %s165, 8
      %s169 = sadd.s32 %s167, %s168
      %s170 = smul.addr %s169, 4
      %s171 = scalar_lea.vmem %s0, %s170
      %s172 = smul.u32 8, %s18
      %s173 = smul.u32 8, %s18
      %p174 = scmp.lt.s32.totalorder %s17, 1
      %s175 = scalar_select %p174, %s17, 1
      %p176 = scmp.lt.s32.totalorder %s173, 7
      %s177 = scalar_select %p176, %s173, 7
      %s178 = smul.addr %s175, 8
      %s179 = sadd.s32 %s177, %s178
      %s180 = smul.addr %s179, 8
      %s181 = scalar_lea.vmem %s2, %s180
      %s182 = smul.u32 8, %s18
      %v184 = vld [vmem:[%s171] sm:$0xf]
      %v185 = vld [vmem:[%s171 + $0x4] sm:$0xf]
      %v186 = vld [vmem:[%s171 + $0x8] sm:$0xf]
      %v187 = vld [vmem:[%s171 + $0xc] sm:$0xf]
      %v188 = vld [vmem:[%s171 + $0x10] sm:$0xf]
      %v189 = vld [vmem:[%s171 + $0x14] sm:$0xf]
      %v190 = vld [vmem:[%s171 + $0x18] sm:$0xf]
      %v191 = vld [vmem:[%s171 + $0x1c] sm:$0xf]
      %v192 = vld [vmem:[%s1] sm:$0xf]
      %v193 = vld [vmem:[%s1 + $0x4] sm:$0xf]
      %v194 = vld [vmem:[%s1 + $0x8] sm:$0xf]
      %v195 = vld [vmem:[%s1 + $0xc] sm:$0xf]
      %v196 = vld [vmem:[%s1 + $0x10] sm:$0xf]
      %v197 = vld [vmem:[%s1 + $0x14] sm:$0xf]
      %v198 = vld [vmem:[%s1 + $0x18] sm:$0xf]
      %v199 = vld [vmem:[%s1 + $0x1c] sm:$0xf]
      %v200 = vld [vmem:[%s1 + $0x20] sm:$0xf]
      %v201 = vld [vmem:[%s1 + $0x24] sm:$0xf]
      %v202 = vld [vmem:[%s1 + $0x28] sm:$0xf]
      %v203 = vld [vmem:[%s1 + $0x2c] sm:$0xf]
      %v204 = vld [vmem:[%s1 + $0x30] sm:$0xf]
      %v205 = vld [vmem:[%s1 + $0x34] sm:$0xf]
      %v206 = vld [vmem:[%s1 + $0x38] sm:$0xf]
      %v207 = vld [vmem:[%s1 + $0x3c] sm:$0xf]
      %v216 = vunpack.c.l.b16 %v184
      %v217 = vunpack.c.l.b16 %v185
      %v218 = vunpack.c.l.b16 %v186
      %v219 = vunpack.c.l.b16 %v187
      %v220 = vunpack.c.l.b16 %v188
      %v221 = vunpack.c.l.b16 %v189
      %v222 = vunpack.c.l.b16 %v190
      %v223 = vunpack.c.l.b16 %v191
      %v224 = vpack.c.b16 %v217, %v216
      %v225 = vpack.c.b16 %v219, %v218
      %v226 = vpack.c.b16 %v221, %v220
      %v227 = vpack.c.b16 %v223, %v222
      %v248 = vunpack.c.l.b16 %v192
      %v249 = vunpack.c.l.b16 %v193
      %v250 = vunpack.c.l.b16 %v194
      %v251 = vunpack.c.l.b16 %v195
      %v252 = vunpack.c.l.b16 %v196
      %v253 = vunpack.c.l.b16 %v197
      %v254 = vunpack.c.l.b16 %v198
      %v255 = vunpack.c.l.b16 %v199
      %v256 = vunpack.c.l.b16 %v200
      %v257 = vunpack.c.l.b16 %v201
      %v258 = vunpack.c.l.b16 %v202
      %v259 = vunpack.c.l.b16 %v203
      %v260 = vunpack.c.l.b16 %v204
      %v261 = vunpack.c.l.b16 %v205
      %v262 = vunpack.c.l.b16 %v206
      %v263 = vunpack.c.l.b16 %v207
      %v264 = vpack.c.b16 %v249, %v248
      %v265 = vpack.c.b16 %v251, %v250
      %v266 = vpack.c.b16 %v253, %v252
      %v267 = vpack.c.b16 %v255, %v254
      %v268 = vpack.c.b16 %v257, %v256
      %v269 = vpack.c.b16 %v259, %v258
      %v270 = vpack.c.b16 %v261, %v260
      %v271 = vpack.c.b16 %v263, %v262
      %280 = vmatprep.subr.bf16.mxu0 0
      %281 = vmatpush1.bf16.msra.mxu0 %v264
      %282 = vmatprep.subr.bf16.mxu0 0
      %283 = vmatpush1.bf16.msra.mxu0 %v265
      %284 = vmatprep.subr.bf16.mxu0 0
      %285 = vmatpush1.bf16.msra.mxu0 %v266
      %286 = vmatprep.subr.bf16.mxu0 0
      %287 = vmatpush1.bf16.msra.mxu0 %v267
      %288 = vmatprep.subr.bf16.mxu0 0
      %289 = vmatpush1.bf16.msra.mxu0 %v268
      %290 = vmatprep.subr.bf16.mxu0 0
      %291 = vmatpush1.bf16.msra.mxu0 %v269
      %292 = vmatprep.subr.bf16.mxu0 0
      %293 = vmatpush1.bf16.msra.mxu0 %v270
      %294 = vmatprep.subr.bf16.mxu0 0
      %295 = vmatpush1.bf16.msra.mxu0 %v271
      %296 = vmatprep.subr.bf16.mxu0 0
      %297 = vmatpush1.bf16.msra.mxu0 0
      %298 = vmatprep.subr.bf16.mxu0 0
      %299 = vmatpush1.bf16.msra.mxu0 0
      %300 = vmatprep.subr.bf16.mxu0 0
      %301 = vmatpush1.bf16.msra.mxu0 0
      %302 = vmatprep.subr.bf16.mxu0 0
      %303 = vmatpush1.bf16.msra.mxu0 0
      %304 = vmatprep.subr.bf16.mxu0 0
      %305 = vmatpush1.bf16.msra.mxu0 0
      %306 = vmatprep.subr.bf16.mxu0 0
      %307 = vmatpush1.bf16.msra.mxu0 0
      %308 = vmatprep.subr.bf16.mxu0 0
      %309 = vmatpush1.bf16.msra.mxu0 0
      %310 = vmatprep.subr.bf16.mxu0 0
      %311 = vmatpush1.bf16.msra.mxu0 0
      %312 = vmatprep.mubr.bf16.mxu0 0
      %313 = vmatmul.mubr.bf16.gmra.mrb[0].mxu0 %v224
      %v314 = vpop.f32.mrb[0].mxu0
      %v315 = vadd.f32 0.0, %v314
      %v316 = vpop.f32.mrb[0].mxu0
      %v317 = vpop.f32.mrb[0].mxu0
      %v318 = vadd.f32 0.0, %v317
      %v319 = vpop.f32.mrb[0].mxu0
      %320 = vmatprep.mubr.bf16.mxu0 0
      %321 = vmatmul.mubr.bf16.gmra.mrb[0].mxu0 %v225
      %v322 = vpop.f32.mrb[0].mxu0
      %v323 = vadd.f32 0.0, %v322
      %v324 = vpop.f32.mrb[0].mxu0
      %v325 = vpop.f32.mrb[0].mxu0
      %v326 = vadd.f32 0.0, %v325
      %v327 = vpop.f32.mrb[0].mxu0
      %328 = vmatprep.mubr.bf16.mxu0 0
      %329 = vmatmul.mubr.bf16.gmra.mrb[0].mxu0 %v226
      %v330 = vpop.f32.mrb[0].mxu0
      %v331 = vadd.f32 0.0, %v330
      %v332 = vpop.f32.mrb[0].mxu0
      %v333 = vpop.f32.mrb[0].mxu0
      %v334 = vadd.f32 0.0, %v333
      %v335 = vpop.f32.mrb[0].mxu0
      %336 = vmatprep.mubr.bf16.mxu0 0
      %337 = vmatmul.mubr.bf16.gmra.mrb[0].mxu0 %v227
      %v338 = vpop.f32.mrb[0].mxu0
      %v339 = vadd.f32 0.0, %v338
      %v340 = vpop.f32.mrb[0].mxu0
      %v341 = vpop.f32.mrb[0].mxu0
      %v342 = vadd.f32 0.0, %v341
      %v343 = vpop.f32.mrb[0].mxu0
      %344 = vdwg.mxu0
      %345 = vst [vmem:[%s181] sm:$0xff] %v315
      %346 = vst [vmem:[%s181 + $0x8] sm:$0xff] %v318
      %347 = vst [vmem:[%s181 + $0x10] sm:$0xff] %v323
      %348 = vst [vmem:[%s181 + $0x18] sm:$0xff] %v326
      %349 = vst [vmem:[%s181 + $0x20] sm:$0xff] %v331
      %350 = vst [vmem:[%s181 + $0x28] sm:$0xff] %v334
      %351 = vst [vmem:[%s181 + $0x30] sm:$0xff] %v339
      %352 = vst [vmem:[%s181 + $0x38] sm:$0xff] %v342
      %s353 = smul.u32 8, %s18
      %p354 = scmp.lt.s32.totalorder %s17, 1
      %s355 = scalar_select %p354, %s17, 1
      %p356 = scmp.lt.s32.totalorder %s353, 7
      %s357 = scalar_select %p356, %s353, 7
      %s358 = smul.addr %s355, 8
      %s359 = sadd.s32 %s357, %s358
      %s360 = smul.addr %s359, 8
      %s361 = scalar_lea.vmem %s2, %s360
      // Predicated region
      $region29: #{conv_start_forward.1} parent=27 // pred_check
        %p362 = pneg %p94
      $region30: #{conv_start_forward.1} parent=27 // pred_check_branch
        %364 = sbr.rel (%p362) target = $region32
      $region31: #{conv_start_forward.1} parent=27 // pred_region
        %s365 = smul.u32 8, %s18
      $region32: #{conv_start_forward.1} parent=27 // pred_fallthru
        _
    $region28: #{conv_start_forward.1} parent=5 // pred_fallthru
      _
    %p366 = scmp.le.s32.totalorder 2, %s8
    // Predicated region
    $region33: #{conv_start_forward.1} parent=5 // pred_check
      %p367 = pneg %p366
    $region34: #{conv_start_forward.1} parent=5 // pred_check_branch
      %369 = sbr.rel (%p367) target = $region36
    $region35: #{conv_start_forward.1} parent=5 // pred_region
      %s370 = ssub.s32 %s8, 2
      // Predicated region
      $region37: #{conv_start_forward.1} parent=35 // pred_check
        %p371 = pneg %p100
      $region38: #{conv_start_forward.1} parent=35 // pred_check_branch
        %373 = sbr.rel (%p371) target = $region40
      $region39: #{conv_start_forward.1} parent=35 // pred_region
        %s374 = smul.u32 8, %s20
        %p375 = scmp.lt.s32.totalorder %s19, 1
        %s376 = scalar_select %p375, %s19, 1
        %p377 = scmp.lt.s32.totalorder %s374, 7
        %s378 = scalar_select %p377, %s374, 7
        %s379 = smul.addr %s376, 8
        %s380 = sadd.s32 %s378, %s379
        %s381 = smul.addr %s380, 8
        %s382 = scalar_lea.vmem %s2, %s381
      $region40: #{conv_start_forward.1} parent=35 // pred_fallthru
        _
    $region36: #{conv_start_forward.1} parent=5 // pred_fallthru
      _
  $region6: #{conv_start_forward.1} parent=0 // loop_footer
    %s12 = sadd.s32 1, %s8
  $region7: #{conv_start_forward.1} parent=0 // loop_footer_branch
    %7 = sbr.rel target = $region3
  $region8: #{conv_start_forward.1} parent=0 // loop_exit
    _

</llo_original>
